<compile_context>
chip_gen: v7x
topology: tpu7x:2x2x1
jax: 0.10.0
libtpu: 0.0.40
codegen_flags: <defaults>
</compile_context>

<pallas_src>
import functools
import math

import numpy as np
import jax
import jax.numpy as jnp
from jax.experimental import pallas as pl
from jax.experimental.pallas import tpu as pltpu

_LANES = 128


def _sublane_multiple(dtype):
    return {4: 8, 2: 16, 1: 32}.get(jnp.dtype(dtype).itemsize, 8)


def _cb_loss_kernel(x_ref, z_ref, w_ref, out_ref, acc_ref, *,
                    inv_n, tb, fold, full_rows, rem):
    """Grid axis 0 walks row-tiles of the lane-dense (rows, 128) packing.

    acc_ref: (fold, 128) f32 running sum of UNWEIGHTED bce, folded so that row
    `a` of the accumulator always corresponds to class-weight row `a % period`.
    The weight multiply, cross-lane reduce and 1/N scale happen once, at the end.
    """
    step = pl.program_id(0)
    last = pl.num_programs(0) - 1

    @pl.when(step == 0)
    def _init():
        acc_ref[...] = jnp.zeros_like(acc_ref)

    def bce_tile():
        x = x_ref[...].astype(jnp.float32)
        z = z_ref[...].astype(jnp.float32)
        # Numerically stable binary_cross_entropy_with_logits (matches PyTorch):
        #   max(x, 0) - x*z + log(1 + exp(-|x|))
        return jnp.maximum(x, 0.0) - x * z + jnp.log1p(jnp.exp(-jnp.abs(x)))

    def accumulate(b):
        acc_ref[...] += jnp.sum(b.reshape(tb // fold, fold, _LANES), axis=0)

    # Hot path: every tile except the last is fully valid -> no masking work.
    @pl.when(step != last)
    def _hot():
        accumulate(bce_tile())

    # Last tile: mask out-of-range elements (ragged tile / <128-element tail /
    # tiny-input fold padding) by global index, then finalize.
    @pl.when(step == last)
    def _tail_and_finalize():
        b = bce_tile()
        row = step * tb + jax.lax.broadcasted_iota(jnp.int32, (tb, _LANES), 0)
        lane = jax.lax.broadcasted_iota(jnp.int32, (tb, _LANES), 1)
        valid = (row < full_rows) | ((row == full_rows) & (lane < rem))
        accumulate(jnp.where(valid, b, 0.0))
        total = jnp.sum(acc_ref[...] * w_ref[...])
        out_ref[...] = (total * inv_n).reshape(1, 1)


def cb_loss_pallas(logits, labels, weights, *, block_bytes=4 * 1024 * 1024):
    """logits, labels: (B, C) float (any float dtype); weights: (C,). Returns scalar mean loss.

    block_bytes ~ bytes streamed per input per grid step (tile size knob).
    """
    B, C = logits.shape
    n_valid = B * C
    full_rows, rem = divmod(n_valid, _LANES)

    # Lane-dense flatten (a reshape, i.e. free).  Only if B*C is not a multiple
    # of 128 do we pad the flat array by < 128 zeros (one minimal XLA pad pass);
    # the pad value is irrelevant because out-of-range elements are masked
    # in-kernel by index.
    x_flat = logits.reshape(-1)
    z_flat = labels.reshape(-1)
    n_rows = full_rows + (1 if rem else 0)
    if rem:
        tail = _LANES - rem
        x_flat = jnp.pad(x_flat, (0, tail))
        z_flat = jnp.pad(z_flat, (0, tail))
    x2d = x_flat.reshape(n_rows, _LANES)
    z2d = z_flat.reshape(n_rows, _LANES)

    # Periodic class-weight plane: the weight of flat element e is weights[e % C];
    # on a 128-lane row grid this repeats every `period` rows.  `fold` is the
    # accumulator height: a period multiple rounded to the sublane multiple.
    sub = max(_sublane_multiple(logits.dtype), _sublane_multiple(labels.dtype))
    period = C // math.gcd(C, _LANES)
    fold = math.lcm(period, sub)
    w_flat = weights.astype(jnp.float32).reshape(-1)
    w_plane = w_flat[jnp.arange(fold * _LANES) % C].reshape(fold, _LANES)

    if n_rows < fold:
        # Tiny input: bring it up to one accumulator fold (a few KiB of zeros,
        # masked in-kernel) so the fold reshape stays aligned.
        x2d = jnp.pad(x2d, ((0, fold - n_rows), (0, 0)))
        z2d = jnp.pad(z2d, ((0, fold - n_rows), (0, 0)))
        n_rows = fold

    # Tile rows: a multiple of `fold` (hence of 8/16/32 sublanes), sized to
    # ~block_bytes per streamed input per step, never larger than the array.
    # The ragged last tile is handled by in-kernel masking -- no row padding.
    itemsize = max(jnp.dtype(logits.dtype).itemsize, jnp.dtype(labels.dtype).itemsize)
    want_rows = max(1, block_bytes // (_LANES * itemsize))
    tb = max(fold, (want_rows // fold) * fold)
    tb = min(tb, (n_rows // fold) * fold)
    grid = (pl.cdiv(n_rows, tb),)

    kernel = functools.partial(
        _cb_loss_kernel, inv_n=1.0 / float(n_valid), tb=tb, fold=fold,
        full_rows=full_rows, rem=rem)

    bytes_streamed = int(
        n_rows * _LANES * (jnp.dtype(logits.dtype).itemsize
                           + jnp.dtype(labels.dtype).itemsize)
        + fold * _LANES * 4 + 4)
    cost = pl.CostEstimate(flops=8 * n_rows * _LANES,
                           transcendentals=2 * n_rows * _LANES,
                           bytes_accessed=bytes_streamed)

    out = pl.pallas_call(
        kernel,
        out_shape=jax.ShapeDtypeStruct((1, 1), jnp.float32),
        grid_spec=pltpu.PrefetchScalarGridSpec(
            num_scalar_prefetch=0,
            grid=grid,
            in_specs=[
                pl.BlockSpec((tb, _LANES), lambda i: (i, 0)),     # logits tile (streamed)
                pl.BlockSpec((tb, _LANES), lambda i: (i, 0)),     # labels tile (streamed)
                pl.BlockSpec((fold, _LANES), lambda i: (0, 0)),   # weight plane (resident)
            ],
            out_specs=pl.BlockSpec((1, 1), lambda i: (0, 0)),
            scratch_shapes=[pltpu.VMEM((fold, _LANES), jnp.float32)],
        ),
        compiler_params=pltpu.CompilerParams(
            dimension_semantics=("arbitrary",),          # running accumulator over tiles
            vmem_limit_bytes=32 * 1024 * 1024,           # usage ~17 MiB with default tiles
        ),
        cost_estimate=cost,
    )(x2d, z2d, w_plane)
    return out[0, 0]


def make_cb_weights(samples_per_cls, no_of_classes, beta):
    """Deterministic re-implementation of CB_loss.__init__ weight setup."""
    samples_per_cls = np.asarray(samples_per_cls, dtype=np.float64)
    effective_num = 1.0 - np.power(beta, samples_per_cls)
    weights = (1.0 - beta) / effective_num
    weights = weights / np.sum(weights) * no_of_classes
    return jnp.asarray(weights, dtype=jnp.float32)


def _ref_loss(x, z, w):
    x32 = x.astype(jnp.float32)
    z32 = z.astype(jnp.float32)
    w32 = w.reshape(1, -1).astype(jnp.float32)
    bce = jnp.maximum(x32, 0.0) - x32 * z32 + jnp.log1p(jnp.exp(-jnp.abs(x32)))
    return jnp.mean(bce * w32)


if __name__ == "__main__":
    beta = 0.999

    # 1) Small deterministic setup consistent with the module's forward
    #    (exercises the tiny-input fold path, grid=1, fully masked tail rows).
    batch, no_of_classes = 8, 16
    weights = make_cb_weights([10 + 5 * i for i in range(no_of_classes)],
                              no_of_classes, beta)
    key = jax.random.PRNGKey(0)
    k_logits, k_labels = jax.random.split(key)
    logits = jax.random.normal(k_logits, (batch, no_of_classes), dtype=jnp.float32)
    label_idx = jax.random.randint(k_labels, (batch,), 0, no_of_classes)
    labels = jax.nn.one_hot(label_idx, no_of_classes, dtype=jnp.float32)
    loss = cb_loss_pallas(logits, labels, weights)
    jax.block_until_ready(loss)
    assert jnp.allclose(loss, _ref_loss(logits, labels, weights), rtol=2e-5, atol=1e-6), \
        (loss, _ref_loss(logits, labels, weights))

    # 2) bf16 inputs, multi-tile grid with a ragged last tile (rows not a
    #    multiple of the 16-row bf16 tile) -> in-kernel row masking.
    b2, c2 = 200, 16
    k1, k2 = jax.random.split(jax.random.PRNGKey(1))
    lg2 = (jax.random.normal(k1, (b2, c2), dtype=jnp.float32) * 3.0).astype(jnp.bfloat16)
    lb2 = jax.nn.one_hot(jax.random.randint(k2, (b2,), 0, c2), c2, dtype=jnp.bfloat16)
    loss2 = cb_loss_pallas(lg2, lb2, weights, block_bytes=4 * 1024)
    jax.block_until_ready(loss2)
    assert jnp.allclose(loss2, _ref_loss(lg2, lb2, weights), rtol=2e-5, atol=1e-5), \
        (loss2, _ref_loss(lg2, lb2, weights))

    # 3) Class count that does not divide 128 (C=20): periodic weight plane
    #    (period=5) and a partial 128-lane row (B*C % 128 != 0) masked in-kernel.
    b3, c3 = 16, 20
    w3 = make_cb_weights([7 + 3 * i for i in range(c3)], c3, beta)
    k3, k4 = jax.random.split(jax.random.PRNGKey(2))
    lg3 = jax.random.normal(k3, (b3, c3), dtype=jnp.float32)
    lb3 = jax.nn.one_hot(jax.random.randint(k4, (b3,), 0, c3), c3, dtype=jnp.float32)
    loss3 = cb_loss_pallas(lg3, lb3, w3)
    jax.block_until_ready(loss3)
    assert jnp.allclose(loss3, _ref_loss(lg3, lb3, w3), rtol=2e-5, atol=1e-6), \
        (loss3, _ref_loss(lg3, lb3, w3))

    # 4) C=20 with a multi-step grid (general path: period-5 fold, ragged tail).
    b4, c4 = 600, 20
    k5, k6 = jax.random.split(jax.random.PRNGKey(3))
    lg4 = jax.random.normal(k5, (b4, c4), dtype=jnp.float32)
    lb4 = jax.nn.one_hot(jax.random.randint(k6, (b4,), 0, c4), c4, dtype=jnp.float32)
    loss4 = cb_loss_pallas(lg4, lb4, w3, block_bytes=40 * 1024)
    jax.block_until_ready(loss4)
    assert jnp.allclose(loss4, _ref_loss(lg4, lb4, w3), rtol=2e-5, atol=1e-6), \
        (loss4, _ref_loss(lg4, lb4, w3))

    print("KERNEL_OK")
</pallas_src>

<mosaic_0001>
module attributes {stable_mosaic.version = 11 : i64} {
  func.func @_cb_loss_kernel(%arg0: i32, %arg1: memref<8x128xf32, #tpu.memory_space<vmem>>, %arg2: memref<8x128xf32, #tpu.memory_space<vmem>>, %arg3: memref<8x128xf32, #tpu.memory_space<vmem>>, %arg4: memref<1x1xf32, #tpu.memory_space<vmem>>, %arg5: memref<8x128xf32, #tpu.memory_space<vmem>>) attributes {dimension_semantics = [#tpu.dimension_semantics<arbitrary>], iteration_bounds = array<i64: 1>, scalar_prefetch = 0 : i64, scratch_operands = 1 : i64, tpu.core_type = #tpu.core_type<tc>, window_params = [{transform_indices = @transform_0, window_bounds = array<i64: 8, 128>}, {transform_indices = @transform_1, window_bounds = array<i64: 8, 128>}, {pipeline_mode = #tpu.pipeline_mode<synchronous>, transform_indices = @transform_2, window_bounds = array<i64: 8, 128>}, {pipeline_mode = #tpu.pipeline_mode<synchronous>, transform_indices = @transform_3, window_bounds = array<i64: 1, 1>}]} {
    %c0_i32 = arith.constant 0 : i32
    %0 = arith.cmpi eq, %arg0, %c0_i32 : i32
    %1 = arith.extui %0 : i1 to i32
    %c0_i32_0 = arith.constant 0 : i32
    %2 = arith.cmpi ne, %1, %c0_i32_0 : i32
    scf.if %2 {
      %cst = arith.constant 0.000000e+00 : f32
      %9 = vector.broadcast %cst : f32 to vector<8x128xf32>
      %c0 = arith.constant 0 : index
      %c0_5 = arith.constant 0 : index
      %10 = vector.load %arg5[%c0, %c0_5] : memref<8x128xf32, #tpu.memory_space<vmem>>, vector<8x128xf32>
      tpu.vector_store %arg5[%c0, %c0_5], %9 {strides = array<i32>} : memref<8x128xf32, #tpu.memory_space<vmem>>, vector<8x128xf32>,
    } else {
    }
    %c0_i32_1 = arith.constant 0 : i32
    %3 = arith.cmpi ne, %arg0, %c0_i32_1 : i32
    %4 = arith.extui %3 : i1 to i32
    %c0_i32_2 = arith.constant 0 : i32
    %5 = arith.cmpi ne, %4, %c0_i32_2 : i32
    scf.if %5 {
      %c0 = arith.constant 0 : index
      %c0_5 = arith.constant 0 : index
      %9 = vector.load %arg1[%c0, %c0_5] : memref<8x128xf32, #tpu.memory_space<vmem>>, vector<8x128xf32>
      %c0_6 = arith.constant 0 : index
      %c0_7 = arith.constant 0 : index
      %10 = vector.load %arg2[%c0_6, %c0_7] : memref<8x128xf32, #tpu.memory_space<vmem>>, vector<8x128xf32>
      %cst = arith.constant 0.000000e+00 : f32
      %11 = vector.broadcast %cst : f32 to vector<8x128xf32>
      %12 = arith.maximumf %9, %11 : vector<8x128xf32>
      %13 = arith.mulf %9, %10 : vector<8x128xf32>
      %14 = arith.subf %12, %13 : vector<8x128xf32>
      %15 = math.absf %9 : vector<8x128xf32>
      %cst_8 = arith.constant 0.000000e+00 : f32
      %16 = vector.broadcast %cst_8 : f32 to vector<8x128xf32>
      %17 = arith.subf %16, %15 : vector<8x128xf32>
      %18 = math.exp %17 : vector<8x128xf32>
      %19 = math.log1p %18 : vector<8x128xf32>
      %20 = arith.addf %14, %19 : vector<8x128xf32>
      %c0_9 = arith.constant 0 : index
      %c0_10 = arith.constant 0 : index
      %21 = vector.load %arg5[%c0_9, %c0_10] : memref<8x128xf32, #tpu.memory_space<vmem>>, vector<8x128xf32>
      %22 = vector.shape_cast %20 : vector<8x128xf32> to vector<1x8x128xf32>
      %cst_11 = arith.constant dense<0.000000e+00> : vector<8x128xf32>
      %23 = vector.multi_reduction <add>, %22, %cst_11 [0] : vector<1x8x128xf32> to vector<8x128xf32>
      %24 = arith.addf %21, %23 : vector<8x128xf32>
      %c0_12 = arith.constant 0 : index
      %c0_13 = arith.constant 0 : index
      %25 = vector.load %arg5[%c0_12, %c0_13] : memref<8x128xf32, #tpu.memory_space<vmem>>, vector<8x128xf32>
      tpu.vector_store %arg5[%c0_12, %c0_13], %24 {strides = array<i32>} : memref<8x128xf32, #tpu.memory_space<vmem>>, vector<8x128xf32>,
    } else {
    }
    %c0_i32_3 = arith.constant 0 : i32
    %6 = arith.cmpi eq, %arg0, %c0_i32_3 : i32
    %7 = arith.extui %6 : i1 to i32
    %c0_i32_4 = arith.constant 0 : i32
    %8 = arith.cmpi ne, %7, %c0_i32_4 : i32
    scf.if %8 {
      %c0 = arith.constant 0 : index
      %c0_5 = arith.constant 0 : index
      %9 = vector.load %arg1[%c0, %c0_5] : memref<8x128xf32, #tpu.memory_space<vmem>>, vector<8x128xf32>
      %c0_6 = arith.constant 0 : index
      %c0_7 = arith.constant 0 : index
      %10 = vector.load %arg2[%c0_6, %c0_7] : memref<8x128xf32, #tpu.memory_space<vmem>>, vector<8x128xf32>
      %cst = arith.constant 0.000000e+00 : f32
      %11 = vector.broadcast %cst : f32 to vector<8x128xf32>
      %12 = arith.maximumf %9, %11 : vector<8x128xf32>
      %13 = arith.mulf %9, %10 : vector<8x128xf32>
      %14 = arith.subf %12, %13 : vector<8x128xf32>
      %15 = math.absf %9 : vector<8x128xf32>
      %cst_8 = arith.constant 0.000000e+00 : f32
      %16 = vector.broadcast %cst_8 : f32 to vector<8x128xf32>
      %17 = arith.subf %16, %15 : vector<8x128xf32>
      %18 = math.exp %17 : vector<8x128xf32>
      %19 = math.log1p %18 : vector<8x128xf32>
      %20 = arith.addf %14, %19 : vector<8x128xf32>
      %c8_i32 = arith.constant 8 : i32
      %21 = arith.muli %arg0, %c8_i32 : i32
      %22 = tpu.iota {dimensions = array<i32: 0>} : vector<8x128xi32>
      %23 = vector.broadcast %21 : i32 to vector<8x128xi32>
      %24 = arith.addi %23, %22 : vector<8x128xi32>
      %25 = tpu.iota {dimensions = array<i32: 1>} : vector<8x128xi32>
      %c1_i32 = arith.constant 1 : i32
      %26 = vector.broadcast %c1_i32 : i32 to vector<8x128xi32>
      %27 = arith.cmpi slt, %24, %26 : vector<8x128xi32>
      %c1_i32_9 = arith.constant 1 : i32
      %28 = vector.broadcast %c1_i32_9 : i32 to vector<8x128xi32>
      %29 = arith.cmpi eq, %24, %28 : vector<8x128xi32>
      %c0_i32_10 = arith.constant 0 : i32
      %30 = vector.broadcast %c0_i32_10 : i32 to vector<8x128xi32>
      %31 = arith.cmpi slt, %25, %30 : vector<8x128xi32>
      %32 = arith.andi %29, %31 : vector<8x128xi1>
      %33 = arith.ori %27, %32 : vector<8x128xi1>
      %cst_11 = arith.constant 0.000000e+00 : f32
      %34 = vector.broadcast %cst_11 : f32 to vector<8x128xf32>
      %35 = arith.select %33, %20, %34 : vector<8x128xi1>, vector<8x128xf32>
      %c0_12 = arith.constant 0 : index
      %c0_13 = arith.constant 0 : index
      %36 = vector.load %arg5[%c0_12, %c0_13] : memref<8x128xf32, #tpu.memory_space<vmem>>, vector<8x128xf32>
      %37 = vector.shape_cast %35 : vector<8x128xf32> to vector<1x8x128xf32>
      %cst_14 = arith.constant dense<0.000000e+00> : vector<8x128xf32>
      %38 = vector.multi_reduction <add>, %37, %cst_14 [0] : vector<1x8x128xf32> to vector<8x128xf32>
      %39 = arith.addf %36, %38 : vector<8x128xf32>
      %c0_15 = arith.constant 0 : index
      %c0_16 = arith.constant 0 : index
      %40 = vector.load %arg5[%c0_15, %c0_16] : memref<8x128xf32, #tpu.memory_space<vmem>>, vector<8x128xf32>
      tpu.vector_store %arg5[%c0_15, %c0_16], %39 {strides = array<i32>} : memref<8x128xf32, #tpu.memory_space<vmem>>, vector<8x128xf32>,
      %c0_17 = arith.constant 0 : index
      %c0_18 = arith.constant 0 : index
      %41 = vector.load %arg5[%c0_17, %c0_18] : memref<8x128xf32, #tpu.memory_space<vmem>>, vector<8x128xf32>
      %c0_19 = arith.constant 0 : index
      %c0_20 = arith.constant 0 : index
      %42 = vector.load %arg3[%c0_19, %c0_20] : memref<8x128xf32, #tpu.memory_space<vmem>>, vector<8x128xf32>
      %43 = arith.mulf %41, %42 : vector<8x128xf32>
      %44 = vector.shape_cast %43 : vector<8x128xf32> to vector<1x8x128xf32>
      %cst_21 = arith.constant dense<0.000000e+00> : vector<1xf32>
      %45 = vector.multi_reduction <add>, %44, %cst_21 [1, 2] : vector<1x8x128xf32> to vector<1xf32>
      %46 = vector.shape_cast %45 : vector<1xf32> to vector<1x1x1xf32>
      %47 = vector.extract %46[0, 0, 0] : f32 from vector<1x1x1xf32>
      %cst_22 = arith.constant 7.812500e-03 : f32
      %48 = arith.mulf %47, %cst_22 : f32
      %49 = vector.broadcast %48 : f32 to vector<1x1xf32>
      %c0_23 = arith.constant 0 : index
      %c0_24 = arith.constant 0 : index
      %50 = vector.load %arg4[%c0_23, %c0_24] : memref<1x1xf32, #tpu.memory_space<vmem>>, vector<1x1xf32>
      tpu.vector_store %arg4[%c0_23, %c0_24], %49 {strides = array<i32>} : memref<1x1xf32, #tpu.memory_space<vmem>>, vector<1x1xf32>,
    } else {
    }
    return
  }
  func.func @transform_0(%arg0: i32) -> (i32, i32) {
    %c0_i32 = arith.constant 0 : i32
    %c0_i32_0 = arith.constant 0 : i32
    return %arg0, %c0_i32 : i32, i32
  }
  func.func @transform_1(%arg0: i32) -> (i32, i32) {
    %c0_i32 = arith.constant 0 : i32
    %c0_i32_0 = arith.constant 0 : i32
    return %arg0, %c0_i32 : i32, i32
  }
  func.func @transform_2(%arg0: i32) -> (i32, i32) {
    %c0_i32 = arith.constant 0 : i32
    %c0_i32_0 = arith.constant 0 : i32
    %c0_i32_1 = arith.constant 0 : i32
    return %c0_i32, %c0_i32_0 : i32, i32
  }
  func.func @transform_3(%arg0: i32) -> (i32, i32) {
    %c0_i32 = arith.constant 0 : i32
    %c0_i32_0 = arith.constant 0 : i32
    %c0_i32_1 = arith.constant 0 : i32
    return %c0_i32, %c0_i32_0 : i32, i32
  }
}

</mosaic_0001>

<llo_original>
// kernel: tpu_custom_call.1
$region0: #{tpu_custom_call.1}
  #allocation0 [shape = 'u32[]', space=smem, size = 0x4, offset = 0x4, fixed_abs, tag = 'smem constant byte address 0x4 - core index']
  #allocation1 [shape = 'u32[144,128]{1,0:T(1,128)}', space=vmem, size = 0x12000, scoped, tag = 'internal scratch']
  #allocation2 [shape = 'f32[8,128]{1,0:T(8,128)}', space=vmem, size = 0x1000, scoped, tag = 'scratch operand']
  %s0 = inlined_call_operand.hbm [shape: f32[8,128], index: 0, kind: input, shape index: {}]
  %s1 = inlined_call_operand.hbm [shape: f32[8,128], index: 1, kind: input, shape index: {}]
  %s2 = inlined_call_operand.hbm [shape: f32[8,128], index: 2, kind: input, shape index: {}]
  %s3 = inlined_call_operand.hbm [shape: f32[1,1], index: 3, kind: output, shape index: {}]
  %s4 = sld [smem:[#allocation0]]
  $region46: #{tpu_custom_call.1} parent=0
    _
  %s6 = ssub.s32 1, %s4
  %s7 = scalar_select 0, %s6, %s4
  $region1: #{tpu_custom_call.1} parent=0
    #allocation3 [shape = 'u8[4096]{0}', space=vmem, size = 0x1000, scoped, tag = 'input window, operand 0, single buffered']
    #allocation4 [shape = 's32[1]{0}', space=sflag, size = 0x4, scoped, tag = 'scoped memory for tpu_custom_call.1']
    #allocation5 [shape = 's32[1]{0}', space=sflag, size = 0x4, scoped, tag = 'scoped memory for tpu_custom_call.1']
    #allocation6 [shape = 'u8[4096]{0}', space=vmem, size = 0x1000, scoped, tag = 'input window, operand 1, single buffered']
    #allocation7 [shape = 's32[1]{0}', space=sflag, size = 0x4, scoped, tag = 'scoped memory for tpu_custom_call.1']
    #allocation8 [shape = 'u8[4096]{0}', space=vmem, size = 0x1000, scoped, tag = 'input window, operand 2, single buffered']
    #allocation9 [shape = 'u8[512]{0}', space=vmem, size = 0x400, scoped, tag = 'output window, operand 0, single buffered']
    %8 = vsyncpa [#allocation4], 0
    %9 = vsyncpa [#allocation7], 0
    %10 = vsyncpa [#allocation5], 0
    // Predicated region
    $region2: #{tpu_custom_call.1} parent=1 // pred_check
      _
    $region3: #{tpu_custom_call.1} parent=1 // pred_check_branch
      %12 = sbr.rel (0) target = $region5
    $region4: #{tpu_custom_call.1} parent=1 // pred_region
      %s14 = ssub.s32 128, 128
      %15 = vsyncadd [#allocation4], %s14
      %s17 = sshll.u32 [#allocation3], 4
      %s18 = int_to_ptr.vmem [resolvable:$true] %s17
      %20 = dma.hbm_to_vmem [thread:$0]  %s0, 128, %s18, [#allocation4]
    $region5: #{tpu_custom_call.1} parent=1 // pred_fallthru
      _
    // Predicated region
    $region6: #{tpu_custom_call.1} parent=1 // pred_check
      _
    $region7: #{tpu_custom_call.1} parent=1 // pred_check_branch
      %22 = sbr.rel (0) target = $region9
    $region8: #{tpu_custom_call.1} parent=1 // pred_region
      %s24 = ssub.s32 128, 128
      %25 = vsyncadd [#allocation7], %s24
      %s27 = sshll.u32 [#allocation6], 4
      %s28 = int_to_ptr.vmem [resolvable:$true] %s27
      %30 = dma.hbm_to_vmem [thread:$0]  %s1, 128, %s28, [#allocation7]
    $region9: #{tpu_custom_call.1} parent=1 // pred_fallthru
      _
    // Predicated region
    $region10: #{tpu_custom_call.1} parent=1 // pred_check
      _
    $region11: #{tpu_custom_call.1} parent=1 // pred_check_branch
      %32 = sbr.rel (0) target = $region13
    $region12: #{tpu_custom_call.1} parent=1 // pred_region
      %s34 = ssub.s32 128, 128
      %35 = vsyncadd [#allocation7], %s34
      %s37 = sshll.u32 [#allocation8], 4
      %s38 = int_to_ptr.vmem [resolvable:$true] %s37
      %40 = dma.hbm_to_vmem [thread:$0]  %s2, 128, %s38, [#allocation7]
    $region13: #{tpu_custom_call.1} parent=1 // pred_fallthru
      _
    // Predicated region
    $region14: #{tpu_custom_call.1} parent=1 // pred_check
      _
    $region15: #{tpu_custom_call.1} parent=1 // pred_check_branch
      %42 = sbr.rel (0) target = $region17
    $region16: #{tpu_custom_call.1} parent=1 // pred_region
      %43 = dma.done [#allocation4], 128
    $region17: #{tpu_custom_call.1} parent=1 // pred_fallthru
      _
    // Predicated region
    $region18: #{tpu_custom_call.1} parent=1 // pred_check
      _
    $region19: #{tpu_custom_call.1} parent=1 // pred_check_branch
      %45 = sbr.rel (0) target = $region21
    $region20: #{tpu_custom_call.1} parent=1 // pred_region
      %46 = dma.done [#allocation7], 128
    $region21: #{tpu_custom_call.1} parent=1 // pred_fallthru
      _
    // Predicated region
    $region22: #{tpu_custom_call.1} parent=1 // pred_check
      _
    $region23: #{tpu_custom_call.1} parent=1 // pred_check_branch
      %48 = sbr.rel (0) target = $region25
    $region24: #{tpu_custom_call.1} parent=1 // pred_region
      %49 = dma.done [#allocation7], 128
    $region25: #{tpu_custom_call.1} parent=1 // pred_fallthru
      _
    %p50 = scmp.eq.s32.totalorder 0, 0
    // Predicated region
    $region26: #{tpu_custom_call.1} parent=1 // pred_check
      %p51 = pneg %p50
    $region27: #{tpu_custom_call.1} parent=1 // pred_check_branch
      %53 = sbr.rel (%p51) target = $region29
    $region28: #{tpu_custom_call.1} parent=1 // pred_region
      %54 = vst [vmem:[#allocation2] sm:$0xff] 0.0
    $region29: #{tpu_custom_call.1} parent=1 // pred_fallthru
      _
    %p55 = scmp.ne.s32.totalorder 0, 0
    // Predicated region
    $region30: #{tpu_custom_call.1} parent=1 // pred_check
      %p56 = pneg %p55
    $region31: #{tpu_custom_call.1} parent=1 // pred_check_branch
      %58 = sbr.rel (%p56) target = $region33
    $region32: #{tpu_custom_call.1} parent=1 // pred_region
      %v59 = vld [vmem:[#allocation3] sm:$0xff]
      %v60 = vld [vmem:[#allocation6] sm:$0xff]
      %v61 = vmax.f32 %v59, 0.0
      %v62 = vmul.f32 %v59, %v60
      %v63 = vsub.f32 %v61, %v62
      %v64 = vand.u32 2147483647, %v59
      %v65 = vsub.f32 0.0, %v64
      %v66 = vmul.f32 %v65, 1.442695
      %v67 = vpow.pop %v66
      %v68 = vadd.f32 %v67, 1.0
      %v69 = vlog2.pop %v68
      %v70 = vmul.f32 %v69, 0.6931472
      %v71 = vmul.f32 -0.5, %v67
      %v72 = vadd.f32 %v71, 1.0
      %v73 = vmul.f32 %v72, %v67
      %v74 = vand.u32 2147483647, %v67
      %vm75 = vcmp.lt.f32.partialorder %v74, 0.0004427343
      %v76 = vsel %vm75, %v73, %v70
      %v77 = vadd.f32 %v63, %v76
      %v78 = vld [vmem:[#allocation2] sm:$0xff]
      %v79 = vadd.f32 %v77, 0.0
      %v80 = vadd.f32 %v78, %v79
      %81 = vst [vmem:[#allocation2] sm:$0xff] %v80
    $region33: #{tpu_custom_call.1} parent=1 // pred_fallthru
      _
    // Predicated region
    $region34: #{tpu_custom_call.1} parent=1 // pred_check
      %p82 = pneg %p50
    $region35: #{tpu_custom_call.1} parent=1 // pred_check_branch
      %84 = sbr.rel (%p82) target = $region37
    $region36: #{tpu_custom_call.1} parent=1 // pred_region
      %v85 = vld [vmem:[#allocation3] sm:$0xff]
      %v86 = vld [vmem:[#allocation6] sm:$0xff]
      %v87 = vmax.f32 %v85, 0.0
      %v88 = vmul.f32 %v85, %v86
      %v89 = vsub.f32 %v87, %v88
      %v90 = vand.u32 2147483647, %v85
      %v91 = vsub.f32 0.0, %v90
      %v92 = vmul.f32 %v91, 1.442695
      %v93 = vpow.pop %v92
      %v94 = vadd.f32 %v93, 1.0
      %v95 = vlog2.pop %v94
      %v96 = vmul.f32 %v95, 0.6931472
      %v97 = vmul.f32 -0.5, %v93
      %v98 = vadd.f32 %v97, 1.0
      %v99 = vmul.f32 %v98, %v93
      %v100 = vand.u32 2147483647, %v93
      %vm101 = vcmp.lt.f32.partialorder %v100, 0.0004427343
      %v102 = vsel %vm101, %v99, %v96
      %v103 = vadd.f32 %v89, %v102
      %s104 = smul.u32 0, 8
      %v105 = vlaneseq
      %v106 = vshrl.u32 %v105, 7
      %v107 = vstv %s104
      %v108 = vadd.s32 %v107, %v106
      %v109 = vlaneseq
      %v110 = vand.u32 %v109, 127
      %vm111 = vcmp.lt.s32.totalorder %v108, 1
      %vm112 = vcmp.eq.s32.totalorder %v108, 1
      %vm113 = vcmp.lt.s32.totalorder %v110, 0
      %vm114 = vmand %vm112, %vm113
      %vm115 = vmor %vm111, %vm114
      %v116 = vsel %vm115, %v103, 0.0
      %v117 = vld [vmem:[#allocation2] sm:$0xff]
      %v118 = vadd.f32 %v116, 0.0
      %v119 = vadd.f32 %v117, %v118
      %120 = vst [vmem:[#allocation2] sm:$0xff] %v119
      %v121 = vld [vmem:[#allocation2] sm:$0xff]
      %v122 = vld [vmem:[#allocation8] sm:$0xff]
      %v123 = vmul.f32 %v121, %v122
      %124 = vadd.xlane.f32.xlu0 %v123
      %v125 = vpop.xlane.xlu0 %124
      %v126 = vrot.slane %v125, 4
      %v127 = vadd.f32 %v125, %v126
      %v128 = vrot.slane %v127, 2
      %v129 = vadd.f32 %v127, %v128
      %v130 = vrot.slane %v129, 1
      %v131 = vadd.f32 %v129, %v130
      %s132 = vtos %v131
      %s133 = smul.f32 %s132, 0.0078125
      %v134 = vstv %s133
      %vm135 = vcmask 0
      %136 = vst.msk [vmem:[#allocation9] sm:$0x1] %vm135, %v134
    $region37: #{tpu_custom_call.1} parent=1 // pred_fallthru
      _
    // Predicated region
    $region38: #{tpu_custom_call.1} parent=1 // pred_check
      _
    $region39: #{tpu_custom_call.1} parent=1 // pred_check_branch
      %138 = sbr.rel (0) target = $region41
    $region40: #{tpu_custom_call.1} parent=1 // pred_region
      %s140 = ssub.s32 16, 16
      %141 = vsyncadd [#allocation5], %s140
      %s143 = sshll.u32 [#allocation9], 4
      %s144 = int_to_ptr.vmem [resolvable:$true] %s143
      %146 = dma.vmem_to_hbm [thread:$0]  %s144, 16, %s3, [#allocation5]
    $region41: #{tpu_custom_call.1} parent=1 // pred_fallthru
      _
    // Predicated region
    $region42: #{tpu_custom_call.1} parent=1 // pred_check
      _
    $region43: #{tpu_custom_call.1} parent=1 // pred_check_branch
      %148 = sbr.rel (0) target = $region45
    $region44: #{tpu_custom_call.1} parent=1 // pred_region
      %149 = dma.done [#allocation5], 16
    $region45: #{tpu_custom_call.1} parent=1 // pred_fallthru
      _
    %150 = vsyncpa [#allocation4], 1
    %151 = vsyncpa [#allocation7], 1
    %152 = vsyncpa [#allocation5], 1

</llo_original>
